<compile_context>
chip_gen: v7x
topology: tpu7x:2x2x1
jax: 0.10.0
libtpu: 0.0.40
codegen_flags: <defaults>
</compile_context>

<pallas_src>
import math

import jax
import jax.numpy as jnp
from jax.experimental import pallas as pl
from jax.experimental.pallas import tpu as pltpu


# ---------------------------------------------------------------------------
# Chip-aware tile / VMEM heuristics.
# ---------------------------------------------------------------------------
def _vmem_capacity_bytes():
    try:
        return int(pltpu.get_tpu_info().vmem_capacity_bytes)
    except Exception:
        return 128 * 1024 * 1024


def _vmem_limit_bytes():
    cap = _vmem_capacity_bytes()
    return int(min(cap * 3 // 4, 96 * 1024 * 1024))


def _default_tile_targets():
    # v7x: 64 MiB VMEM per TensorCore -> smaller tiles; v5e/v6e: 128 MiB.
    if _vmem_capacity_bytes() <= 64 * 1024 * 1024:
        return 512, 256          # (tm_target, th_target)
    return 1024, 512


def _round_up(a, b):
    return (a + b - 1) // b * b


def _pick_token_tile(N, target):
    """Token tile: multiple of 256 (MXU friendly), capped by target and N."""
    tm = min(target, _round_up(N, 256))
    # Prefer >= 2 token tiles when there is enough work: the leading
    # "parallel" grid axis is sharded across v7x's two TensorCores.
    if N > 256 and N <= tm:
        tm = max(256, _round_up(pl.cdiv(N, 2), 256))
    return tm


def _pick_hidden_tile(H, target):
    """Hidden-dim tile th: multiple of 128 that divides H."""
    if H <= 128 or H % 128 != 0:
        return H
    th = min(target, H)
    th = (th // 128) * 128
    while H % th != 0:
        th -= 128
    return th


# ---------------------------------------------------------------------------
# Router kernel: fused (route | noise) matmul, tiled over tokens, bf16 MXU.
#   out[tile] = x[tile] @ [Wr | Wn] + [br | bn]
# ---------------------------------------------------------------------------
def router_kernel(x_ref, w_ref, b_ref, out_ref):
    out_ref[...] = (
        jnp.dot(x_ref[...], w_ref[...], preferred_element_type=jnp.float32)
        + b_ref[...]
    )


def router_logits(x_bf16, w_rn_bf16, b_rn, *, tm):
    Np, C = x_bf16.shape
    Eo = w_rn_bf16.shape[1]          # 2 * n_r_experts
    return pl.pallas_call(
        router_kernel,
        out_shape=jax.ShapeDtypeStruct((Np, Eo), jnp.float32),
        grid_spec=pltpu.PrefetchScalarGridSpec(
            num_scalar_prefetch=0,
            grid=(Np // tm,),
            in_specs=[
                pl.BlockSpec((tm, C), lambda i: (i, 0)),
                pl.BlockSpec((C, Eo), lambda i: (0, 0)),
                pl.BlockSpec((1, Eo), lambda i: (0, 0)),
            ],
            out_specs=pl.BlockSpec((tm, Eo), lambda i: (i, 0)),
        ),
        compiler_params=pltpu.CompilerParams(
            dimension_semantics=("parallel",),
            vmem_limit_bytes=_vmem_limit_bytes(),
        ),
    )(x_bf16, w_rn_bf16, b_rn.reshape(1, Eo))


# ---------------------------------------------------------------------------
# MoE expert kernel: grid = (token_tiles, active_expert_slot, hidden_chunks)
#   f_out[tile] = sum_{active e} gate[tile, e] * Expert_e(x[tile])
# Expert weights are indexed data-dependently through a scalar-prefetched,
# per-tile compacted active-expert list; padded slots repeat the last active
# expert id, so their weight blocks are never re-DMA'd and compute is skipped.
# The hidden dim H = 4C is chunked on the last ("arbitrary") grid axis.
# The residual x is added in the wrapper (x travels in bf16 here).
# ---------------------------------------------------------------------------
def moe_expert_kernel(ids_ref, nact_ref, x_ref, gates_ref,
                      w1_ref, b1_ref, w2_ref, b2_ref, out_ref, g_sc):
    i = pl.program_id(0)     # token tile
    j = pl.program_id(1)     # compacted active-expert slot
    h = pl.program_id(2)     # hidden-dim chunk
    E = gates_ref.shape[1]

    @pl.when((j == 0) & (h == 0))
    def _():
        out_ref[...] = jnp.zeros_like(out_ref)   # f_out accumulator

    active = j < nact_ref[i]

    # Work that is constant across hidden chunks: extract this expert's gate
    # column once into VMEM scratch, and add the gated output bias b2 once.
    @pl.when(active & (h == 0))
    def _():
        e = ids_ref[i * E + j]
        lane = jax.lax.broadcasted_iota(jnp.int32, gates_ref.shape, 1)
        g_sc[...] = jnp.sum(jnp.where(lane == e, gates_ref[...], 0.0),
                            axis=1, keepdims=True)
        out_ref[...] += g_sc[...] * b2_ref[...]

    @pl.when(active)
    def _():
        hid = jnp.dot(x_ref[...], w1_ref[...],
                      preferred_element_type=jnp.float32)
        hid = jnp.maximum(hid + b1_ref[...], 0.0)          # ReLU
        y = jnp.dot(hid.astype(jnp.bfloat16), w2_ref[...],
                    preferred_element_type=jnp.float32)
        out_ref[...] += g_sc[...] * y


def moe_experts(x_bf16, gates_pad, ids_flat, nact, w1, b1, w2, b2, *, tm, th):
    # x_bf16: (Np, C) bf16; gates_pad: (Np, E) f32
    # ids_flat: (n_tiles*E,) i32 compacted active-expert ids (padded w/ repeat)
    # nact: (n_tiles,) i32 number of active experts per tile
    # w1: (E, C, H) bf16; b1: (E, 1, H) f32; w2: (E, H, C) bf16; b2: (E, 1, C) f32
    Np, C = x_bf16.shape
    E, _, H = w1.shape
    n_tiles = Np // tm
    n_h = H // th
    grid = (n_tiles, E, n_h)
    return pl.pallas_call(
        moe_expert_kernel,
        out_shape=jax.ShapeDtypeStruct((Np, C), jnp.float32),
        grid_spec=pltpu.PrefetchScalarGridSpec(
            num_scalar_prefetch=2,
            grid=grid,
            in_specs=[
                pl.BlockSpec((tm, C), lambda i, j, h, ids, cnt: (i, 0)),
                pl.BlockSpec((tm, E), lambda i, j, h, ids, cnt: (i, 0)),
                pl.BlockSpec((None, C, th),
                             lambda i, j, h, ids, cnt: (ids[i * E + j], 0, h)),
                pl.BlockSpec((None, 1, th),
                             lambda i, j, h, ids, cnt: (ids[i * E + j], 0, h)),
                pl.BlockSpec((None, th, C),
                             lambda i, j, h, ids, cnt: (ids[i * E + j], h, 0)),
                pl.BlockSpec((None, 1, C),
                             lambda i, j, h, ids, cnt: (ids[i * E + j], 0, 0)),
            ],
            out_specs=pl.BlockSpec((tm, C), lambda i, j, h, ids, cnt: (i, 0)),
            scratch_shapes=[pltpu.VMEM((tm, 1), jnp.float32)],
        ),
        compiler_params=pltpu.CompilerParams(
            dimension_semantics=("parallel", "arbitrary", "arbitrary"),
            vmem_limit_bytes=_vmem_limit_bytes(),
        ),
    )(ids_flat, nact, x_bf16, gates_pad, w1, b1, w2, b2)


# ---------------------------------------------------------------------------
# Per-tile compacted active-expert schedule (1-D for SMEM friendliness).
# ids[i*E + j] = expert id of the j-th active expert in token tile i; slots
# beyond nact[i] repeat the last active id so the pipeline never re-DMAs them.
# ---------------------------------------------------------------------------
def _active_expert_schedule(gates_pad, n_tiles, tm, E):
    tile_active = (gates_pad.reshape(n_tiles, tm, E) != 0.0).any(axis=1)
    nact = tile_active.sum(axis=1).astype(jnp.int32)
    slot = jnp.arange(E, dtype=jnp.int32)[None, :]
    key = jnp.where(tile_active, slot, slot + E)     # active experts sort first
    order = jnp.argsort(key, axis=1).astype(jnp.int32)
    last = jnp.take_along_axis(order, jnp.maximum(nact[:, None] - 1, 0), axis=1)
    ids = jnp.where(slot < nact[:, None], order, last).astype(jnp.int32)
    return ids.reshape(-1), nact


# ---------------------------------------------------------------------------
# Parameter init (deterministic, nn.Linear-style uniform)
# ---------------------------------------------------------------------------
def init_linear(key, fan_in, fan_out):
    k1, k2 = jax.random.split(key)
    bound = 1.0 / math.sqrt(fan_in)
    w = jax.random.uniform(k1, (fan_in, fan_out), jnp.float32, -bound, bound)
    b = jax.random.uniform(k2, (fan_out,), jnp.float32, -bound, bound)
    return w, b


def init_params(key, n_embd, n_r_experts, n_s_experts):
    n_total = n_r_experts + n_s_experts
    keys = jax.random.split(key, 2 + 2 * n_total)
    wr, br = init_linear(keys[0], n_embd, n_r_experts)
    wn, bn = init_linear(keys[1], n_embd, n_r_experts)
    w1s, b1s, w2s, b2s = [], [], [], []
    for e in range(n_total):
        w1, b1 = init_linear(keys[2 + 2 * e], n_embd, 4 * n_embd)
        w2, b2 = init_linear(keys[3 + 2 * e], 4 * n_embd, n_embd)
        w1s.append(w1); b1s.append(b1.reshape(1, -1))
        w2s.append(w2); b2s.append(b2.reshape(1, -1))
    return dict(
        # fused router weight/bias: [route | noise]
        w_rn=jnp.concatenate([wr, wn], axis=1),
        b_rn=jnp.concatenate([br, bn], axis=0),
        w1=jnp.stack(w1s), b1=jnp.stack(b1s),
        w2=jnp.stack(w2s), b2=jnp.stack(b2s),
    )


# ---------------------------------------------------------------------------
# Full forward (glue in JAX, hot path in Pallas)
# ---------------------------------------------------------------------------
def deepseek_moe_forward(x, params, noise_key, *, n_r_experts, n_s_experts,
                         topk, tm=None, th=None):
    B, T, C = x.shape
    N = B * T
    E = n_r_experts + n_s_experts
    xf = x.reshape(N, C).astype(jnp.float32)

    tm_target, th_target = _default_tile_targets()
    if tm is None:
        tm = _pick_token_tile(N, tm_target)
    n_tiles = pl.cdiv(N, tm)
    Np = n_tiles * tm
    # bf16 copy of x for the MXU kernels; the f32 residual is added at the end
    x_bf16 = jnp.pad(xf, ((0, Np - N), (0, 0))).astype(jnp.bfloat16)

    # ---- router (bf16 Pallas matmul + JAX glue for topk / sparse softmax) ----
    logits = router_logits(x_bf16, params["w_rn"].astype(jnp.bfloat16),
                           params["b_rn"], tm=tm)[:N]
    r_act = logits[:, :n_r_experts]
    noise_lin = logits[:, n_r_experts:]
    noisy = r_act + jax.random.normal(noise_key, r_act.shape, jnp.float32) \
        * jax.nn.softplus(noise_lin)
    topk_logits, idx = jax.lax.top_k(noisy, topk)
    probs = jax.nn.softmax(topk_logits, axis=-1)   # == softmax of -inf-sparse logits
    rows = jnp.arange(N, dtype=jnp.int32)[:, None]
    gates_r = jnp.zeros((N, n_r_experts), jnp.float32).at[rows, idx].add(probs)
    gates = jnp.concatenate(
        [gates_r, jnp.ones((N, n_s_experts), jnp.float32)], axis=1)   # (N, E)
    gates_pad = jnp.pad(gates, ((0, Np - N), (0, 0)))                 # pad rows: 0

    ids_flat, nact = _active_expert_schedule(gates_pad, n_tiles, tm, E)

    # ---- experts (Pallas, bf16 MXU, f32 acc, data-dependent expert index) ----
    H = params["w1"].shape[2]
    if th is None:
        th = _pick_hidden_tile(H, th_target)
    f_out = moe_experts(
        x_bf16, gates_pad, ids_flat, nact,
        params["w1"].astype(jnp.bfloat16), params["b1"],
        params["w2"].astype(jnp.bfloat16), params["b2"],
        tm=tm, th=th)[:N]
    return (xf + f_out).reshape(B, T, C), gates


# ---------------------------------------------------------------------------
# Pure-JAX f32 reference (same gates) for a correctness check
# ---------------------------------------------------------------------------
def reference_forward(x, params, gates):
    B, T, C = x.shape
    xf = x.reshape(-1, C)
    E = params["w1"].shape[0]
    f_out = jnp.zeros_like(xf)
    for e in range(E):
        h = jnp.maximum(xf @ params["w1"][e] + params["b1"][e], 0.0)
        y = h @ params["w2"][e] + params["b2"][e]
        f_out = f_out + gates[:, e:e + 1] * y
    return (xf + f_out).reshape(B, T, C)


if __name__ == "__main__":
    n_embd = 32
    n_r_experts = 4
    n_s_experts = 2
    topk = 2
    B, T = 2, 8

    key = jax.random.PRNGKey(0)
    kp, kx, kn = jax.random.split(key, 3)
    params = init_params(kp, n_embd, n_r_experts, n_s_experts)
    x = jax.random.normal(kx, (B, T, n_embd), jnp.float32)

    out, gates = deepseek_moe_forward(
        x, params, kn, n_r_experts=n_r_experts, n_s_experts=n_s_experts,
        topk=topk)
    out = jax.block_until_ready(out)

    ref = reference_forward(x, params, gates)
    assert out.shape == x.shape
    # bf16 matmuls with f32 accumulation vs f32 reference -> loosened tolerance
    assert jnp.allclose(out, ref, rtol=5e-2, atol=5e-2), "mismatch vs reference"
    print("KERNEL_OK")
</pallas_src>

<mosaic_0001>
module attributes {stable_mosaic.version = 11 : i64} {
  func.func @router_kernel(%arg0: i32, %arg1: memref<256x32xbf16, #tpu.memory_space<vmem>>, %arg2: memref<32x8xbf16, #tpu.memory_space<vmem>>, %arg3: memref<1x8xf32, #tpu.memory_space<vmem>>, %arg4: memref<256x8xf32, #tpu.memory_space<vmem>>) attributes {dimension_semantics = [#tpu.dimension_semantics<parallel>], iteration_bounds = array<i64: 1>, scalar_prefetch = 0 : i64, scratch_operands = 0 : i64, tpu.core_type = #tpu.core_type<tc>, window_params = [{transform_indices = @transform_0, window_bounds = array<i64: 256, 32>}, {pipeline_mode = #tpu.pipeline_mode<synchronous>, transform_indices = @transform_1, window_bounds = array<i64: 32, 8>}, {pipeline_mode = #tpu.pipeline_mode<synchronous>, transform_indices = @transform_2, window_bounds = array<i64: 1, 8>}, {transform_indices = @transform_3, window_bounds = array<i64: 256, 8>}]} {
    %c0 = arith.constant 0 : index
    %c0_0 = arith.constant 0 : index
    %0 = vector.load %arg1[%c0, %c0_0] : memref<256x32xbf16, #tpu.memory_space<vmem>>, vector<256x32xbf16>
    %c0_1 = arith.constant 0 : index
    %c0_2 = arith.constant 0 : index
    %1 = vector.load %arg2[%c0_1, %c0_2] : memref<32x8xbf16, #tpu.memory_space<vmem>>, vector<32x8xbf16>
    %cst = arith.constant dense<0.000000e+00> : vector<256x8xf32>
    %2 = tpu.matmul %0, %1, %cst {dimension_numbers = #tpu.dot_dimension_numbers<[1], [0], [0], [1], [0, 0, 1, 1], [], []>} : vector<256x32xbf16>, vector<32x8xbf16>, vector<256x8xf32> -> vector<256x8xf32>
    %c0_3 = arith.constant 0 : index
    %c0_4 = arith.constant 0 : index
    %3 = vector.load %arg3[%c0_3, %c0_4] : memref<1x8xf32, #tpu.memory_space<vmem>>, vector<1x8xf32>
    %4 = vector.broadcast %3 : vector<1x8xf32> to vector<256x8xf32>
    %5 = arith.addf %2, %4 : vector<256x8xf32>
    %c0_5 = arith.constant 0 : index
    %c0_6 = arith.constant 0 : index
    %6 = vector.load %arg4[%c0_5, %c0_6] : memref<256x8xf32, #tpu.memory_space<vmem>>, vector<256x8xf32>
    tpu.vector_store %arg4[%c0_5, %c0_6], %5 {strides = array<i32>} : memref<256x8xf32, #tpu.memory_space<vmem>>, vector<256x8xf32>,
    return
  }
  func.func @transform_0(%arg0: i32) -> (i32, i32) {
    %c0_i32 = arith.constant 0 : i32
    %c0_i32_0 = arith.constant 0 : i32
    return %arg0, %c0_i32 : i32, i32
  }
  func.func @transform_1(%arg0: i32) -> (i32, i32) {
    %c0_i32 = arith.constant 0 : i32
    %c0_i32_0 = arith.constant 0 : i32
    %c0_i32_1 = arith.constant 0 : i32
    return %c0_i32, %c0_i32_0 : i32, i32
  }
  func.func @transform_2(%arg0: i32) -> (i32, i32) {
    %c0_i32 = arith.constant 0 : i32
    %c0_i32_0 = arith.constant 0 : i32
    %c0_i32_1 = arith.constant 0 : i32
    return %c0_i32, %c0_i32_0 : i32, i32
  }
  func.func @transform_3(%arg0: i32) -> (i32, i32) {
    %c0_i32 = arith.constant 0 : i32
    %c0_i32_0 = arith.constant 0 : i32
    return %arg0, %c0_i32 : i32, i32
  }
}

</mosaic_0001>

<llo_original>
// kernel: tpu_custom_call.1
$region0: #{tpu_custom_call.1}
  #allocation0 [shape = 'u32[]', space=smem, size = 0x4, offset = 0x4, fixed_abs, tag = 'smem constant byte address 0x4 - core index']
  #allocation1 [shape = 'u32[144,128]{1,0:T(1,128)}', space=vmem, size = 0x12000, scoped, tag = 'internal scratch']
  %s0 = inlined_call_operand.hbm [shape: bf16[256,32], index: 0, kind: input, shape index: {}]
  %s1 = inlined_call_operand.hbm [shape: bf16[32,8], index: 1, kind: input, shape index: {}]
  %s2 = inlined_call_operand.hbm [shape: f32[1,8], index: 2, kind: input, shape index: {}]
  %s3 = inlined_call_operand.hbm [shape: f32[256,8], index: 3, kind: output, shape index: {}]
  %s4 = sld [smem:[#allocation0]]
  $region34: #{tpu_custom_call.1} parent=0
    _
  %s6 = ssub.s32 1, %s4
  %s7 = scalar_select 0, %s6, %s4
  $region1: #{tpu_custom_call.1} parent=0
    #allocation2 [shape = 'u8[65536]{0}', space=vmem, size = 0x10000, scoped, tag = 'input window, operand 0, single buffered']
    #allocation3 [shape = 's32[1]{0}', space=sflag, size = 0x4, scoped, tag = 'scoped memory for tpu_custom_call.1']
    #allocation4 [shape = 's32[1]{0}', space=sflag, size = 0x4, scoped, tag = 'scoped memory for tpu_custom_call.1']
    #allocation5 [shape = 'u8[8192]{0}', space=vmem, size = 0x2000, scoped, tag = 'input window, operand 1, single buffered']
    #allocation6 [shape = 's32[1]{0}', space=sflag, size = 0x4, scoped, tag = 'scoped memory for tpu_custom_call.1']
    #allocation7 [shape = 'u8[512]{0}', space=vmem, size = 0x400, scoped, tag = 'input window, operand 2, single buffered']
    #allocation8 [shape = 'u8[131072]{0}', space=vmem, size = 0x20000, scoped, tag = 'output window, operand 0, single buffered']
    %8 = vsyncpa [#allocation3], 0
    %9 = vsyncpa [#allocation6], 0
    %10 = vsyncpa [#allocation4], 0
    // Predicated region
    $region2: #{tpu_custom_call.1} parent=1 // pred_check
      _
    $region3: #{tpu_custom_call.1} parent=1 // pred_check_branch
      %12 = sbr.rel (0) target = $region5
    $region4: #{tpu_custom_call.1} parent=1 // pred_region
      %s14 = ssub.s32 2048, 2048
      %15 = vsyncadd [#allocation3], %s14
      %s16 = sshll.u32 [#allocation2], 4
      %s17 = int_to_ptr.vmem [resolvable:$true] %s16
      %22 = dma.hbm_to_vmem [thread:$0]  %s0, 2048, %s17, [#allocation3], 64, 64, 4
    $region5: #{tpu_custom_call.1} parent=1 // pred_fallthru
      _
    // Predicated region
    $region6: #{tpu_custom_call.1} parent=1 // pred_check
      _
    $region7: #{tpu_custom_call.1} parent=1 // pred_check_branch
      %24 = sbr.rel (0) target = $region9
    $region8: #{tpu_custom_call.1} parent=1 // pred_region
      %s26 = ssub.s32 256, 256
      %27 = vsyncadd [#allocation6], %s26
      %s28 = sshll.u32 [#allocation5], 4
      %s29 = int_to_ptr.vmem [resolvable:$true] %s28
      %34 = dma.hbm_to_vmem [thread:$0]  %s1, 256, %s29, [#allocation6], 64, 64, 4
    $region9: #{tpu_custom_call.1} parent=1 // pred_fallthru
      _
    // Predicated region
    $region10: #{tpu_custom_call.1} parent=1 // pred_check
      _
    $region11: #{tpu_custom_call.1} parent=1 // pred_check_branch
      %36 = sbr.rel (0) target = $region13
    $region12: #{tpu_custom_call.1} parent=1 // pred_region
      %s38 = ssub.s32 16, 16
      %39 = vsyncadd [#allocation6], %s38
      %s41 = sshll.u32 [#allocation7], 4
      %s42 = int_to_ptr.vmem [resolvable:$true] %s41
      %44 = dma.hbm_to_vmem [thread:$0]  %s2, 16, %s42, [#allocation6]
    $region13: #{tpu_custom_call.1} parent=1 // pred_fallthru
      _
    // Predicated region
    $region14: #{tpu_custom_call.1} parent=1 // pred_check
      _
    $region15: #{tpu_custom_call.1} parent=1 // pred_check_branch
      %46 = sbr.rel (0) target = $region17
    $region16: #{tpu_custom_call.1} parent=1 // pred_region
      %47 = dma.done [#allocation3], 2048
    $region17: #{tpu_custom_call.1} parent=1 // pred_fallthru
      _
    // Predicated region
    $region18: #{tpu_custom_call.1} parent=1 // pred_check
      _
    $region19: #{tpu_custom_call.1} parent=1 // pred_check_branch
      %49 = sbr.rel (0) target = $region21
    $region20: #{tpu_custom_call.1} parent=1 // pred_region
      %50 = dma.done [#allocation6], 256
    $region21: #{tpu_custom_call.1} parent=1 // pred_fallthru
      _
    // Predicated region
    $region22: #{tpu_custom_call.1} parent=1 // pred_check
      _
    $region23: #{tpu_custom_call.1} parent=1 // pred_check_branch
      %52 = sbr.rel (0) target = $region25
    $region24: #{tpu_custom_call.1} parent=1 // pred_region
      %53 = dma.done [#allocation6], 16
    $region25: #{tpu_custom_call.1} parent=1 // pred_fallthru
      _
    %v55 = vld [vmem:[#allocation2] sm:$0xf]
    %v56 = vld [vmem:[#allocation2 + $0x4] sm:$0xf]
    %v57 = vld [vmem:[#allocation2 + $0x8] sm:$0xf]
    %v58 = vld [vmem:[#allocation2 + $0xc] sm:$0xf]
    %v59 = vld [vmem:[#allocation2 + $0x10] sm:$0xf]
    %v60 = vld [vmem:[#allocation2 + $0x14] sm:$0xf]
    %v61 = vld [vmem:[#allocation2 + $0x18] sm:$0xf]
    %v62 = vld [vmem:[#allocation2 + $0x1c] sm:$0xf]
    %v63 = vld [vmem:[#allocation2 + $0x20] sm:$0xf]
    %v64 = vld [vmem:[#allocation2 + $0x24] sm:$0xf]
    %v65 = vld [vmem:[#allocation2 + $0x28] sm:$0xf]
    %v66 = vld [vmem:[#allocation2 + $0x2c] sm:$0xf]
    %v67 = vld [vmem:[#allocation2 + $0x30] sm:$0xf]
    %v68 = vld [vmem:[#allocation2 + $0x34] sm:$0xf]
    %v69 = vld [vmem:[#allocation2 + $0x38] sm:$0xf]
    %v70 = vld [vmem:[#allocation2 + $0x3c] sm:$0xf]
    %v71 = vld [vmem:[#allocation2 + $0x40] sm:$0xf]
    %v72 = vld [vmem:[#allocation2 + $0x44] sm:$0xf]
    %v73 = vld [vmem:[#allocation2 + $0x48] sm:$0xf]
    %v74 = vld [vmem:[#allocation2 + $0x4c] sm:$0xf]
    %v75 = vld [vmem:[#allocation2 + $0x50] sm:$0xf]
    %v76 = vld [vmem:[#allocation2 + $0x54] sm:$0xf]
    %v77 = vld [vmem:[#allocation2 + $0x58] sm:$0xf]
    %v78 = vld [vmem:[#allocation2 + $0x5c] sm:$0xf]
    %v79 = vld [vmem:[#allocation2 + $0x60] sm:$0xf]
    %v80 = vld [vmem:[#allocation2 + $0x64] sm:$0xf]
    %v81 = vld [vmem:[#allocation2 + $0x68] sm:$0xf]
    %v82 = vld [vmem:[#allocation2 + $0x6c] sm:$0xf]
    %v83 = vld [vmem:[#allocation2 + $0x70] sm:$0xf]
    %v84 = vld [vmem:[#allocation2 + $0x74] sm:$0xf]
    %v85 = vld [vmem:[#allocation2 + $0x78] sm:$0xf]
    %v86 = vld [vmem:[#allocation2 + $0x7c] sm:$0xf]
    %v87 = vld [vmem:[#allocation5] sm:$0xf]
    %v88 = vld [vmem:[#allocation5 + $0x4] sm:$0xf]
    %v89 = vld [vmem:[#allocation5 + $0x8] sm:$0xf]
    %v90 = vld [vmem:[#allocation5 + $0xc] sm:$0xf]
    %v91 = vld [vmem:[#allocation7] sm:$0x1]
    %v93 = vlaneseq
    %v94 = vshrl.u32 %v93, 7
    %v95 = vsub.s32 0, %v94
    %v96 = vrot.slane %v91, %v95
    %v130 = vunpack.c.l.b16 %v55
    %v131 = vunpack.c.l.b16 %v56
    %v132 = vunpack.c.l.b16 %v57
    %v133 = vunpack.c.l.b16 %v58
    %v134 = vunpack.c.l.b16 %v59
    %v135 = vunpack.c.l.b16 %v60
    %v136 = vunpack.c.l.b16 %v61
    %v137 = vunpack.c.l.b16 %v62
    %v138 = vunpack.c.l.b16 %v63
    %v139 = vunpack.c.l.b16 %v64
    %v140 = vunpack.c.l.b16 %v65
    %v141 = vunpack.c.l.b16 %v66
    %v142 = vunpack.c.l.b16 %v67
    %v143 = vunpack.c.l.b16 %v68
    %v144 = vunpack.c.l.b16 %v69
    %v145 = vunpack.c.l.b16 %v70
    %v146 = vunpack.c.l.b16 %v71
    %v147 = vunpack.c.l.b16 %v72
    %v148 = vunpack.c.l.b16 %v73
    %v149 = vunpack.c.l.b16 %v74
    %v150 = vunpack.c.l.b16 %v75
    %v151 = vunpack.c.l.b16 %v76
    %v152 = vunpack.c.l.b16 %v77
    %v153 = vunpack.c.l.b16 %v78
    %v154 = vunpack.c.l.b16 %v79
    %v155 = vunpack.c.l.b16 %v80
    %v156 = vunpack.c.l.b16 %v81
    %v157 = vunpack.c.l.b16 %v82
    %v158 = vunpack.c.l.b16 %v83
    %v159 = vunpack.c.l.b16 %v84
    %v160 = vunpack.c.l.b16 %v85
    %v161 = vunpack.c.l.b16 %v86
    %v162 = vpack.c.b16 %v131, %v130
    %v163 = vpack.c.b16 %v133, %v132
    %v164 = vpack.c.b16 %v135, %v134
    %v165 = vpack.c.b16 %v137, %v136
    %v166 = vpack.c.b16 %v139, %v138
    %v167 = vpack.c.b16 %v141, %v140
    %v168 = vpack.c.b16 %v143, %v142
    %v169 = vpack.c.b16 %v145, %v144
    %v170 = vpack.c.b16 %v147, %v146
    %v171 = vpack.c.b16 %v149, %v148
    %v172 = vpack.c.b16 %v151, %v150
    %v173 = vpack.c.b16 %v153, %v152
    %v174 = vpack.c.b16 %v155, %v154
    %v175 = vpack.c.b16 %v157, %v156
    %v176 = vpack.c.b16 %v159, %v158
    %v177 = vpack.c.b16 %v161, %v160
    %v182 = vunpack.c.l.b16 %v87
    %v183 = vunpack.c.l.b16 %v88
    %v184 = vunpack.c.l.b16 %v89
    %v185 = vunpack.c.l.b16 %v90
    %v186 = vpack.c.b16 %v183, %v182
    %v187 = vpack.c.b16 %v185, %v184
    %vm190 = vcmask 261120
    %v192 = vsel %vm190, %v162, 0
    %v195 = vsel %vm190, %v163, 0
    %v198 = vsel %vm190, %v164, 0
    %v201 = vsel %vm190, %v165, 0
    %v204 = vsel %vm190, %v166, 0
    %v207 = vsel %vm190, %v167, 0
    %v210 = vsel %vm190, %v168, 0
    %v213 = vsel %vm190, %v169, 0
    %v216 = vsel %vm190, %v170, 0
    %v219 = vsel %vm190, %v171, 0
    %v222 = vsel %vm190, %v172, 0
    %v225 = vsel %vm190, %v173, 0
    %v228 = vsel %vm190, %v174, 0
    %v231 = vsel %vm190, %v175, 0
    %v234 = vsel %vm190, %v176, 0
    %v237 = vsel %vm190, %v177, 0
    %239 = vmatprep.subr.bf16.mxu0 0
    %240 = vmatpush1.bf16.msra.mxu0 %v186
    %241 = vmatprep.subr.bf16.mxu0 0
    %242 = vmatpush1.bf16.msra.mxu0 %v187
    %243 = vmatprep.subr.bf16.mxu0 0
    %244 = vmatpush1.bf16.msra.mxu0 0
    %245 = vmatprep.subr.bf16.mxu0 0
    %246 = vmatpush1.bf16.msra.mxu0 0
    %247 = vmatprep.subr.bf16.mxu0 0
    %248 = vmatpush1.bf16.msra.mxu0 0
    %249 = vmatprep.subr.bf16.mxu0 0
    %250 = vmatpush1.bf16.msra.mxu0 0
    %251 = vmatprep.subr.bf16.mxu0 0
    %252 = vmatpush1.bf16.msra.mxu0 0
    %253 = vmatprep.subr.bf16.mxu0 0
    %254 = vmatpush1.bf16.msra.mxu0 0
    %255 = vmatprep.subr.bf16.mxu0 0
    %256 = vmatpush1.bf16.msra.mxu0 0
    %257 = vmatprep.subr.bf16.mxu0 0
    %258 = vmatpush1.bf16.msra.mxu0 0
    %259 = vmatprep.subr.bf16.mxu0 0
    %260 = vmatpush1.bf16.msra.mxu0 0
    %261 = vmatprep.subr.bf16.mxu0 0
    %262 = vmatpush1.bf16.msra.mxu0 0
    %263 = vmatprep.subr.bf16.mxu0 0
    %264 = vmatpush1.bf16.msra.mxu0 0
    %265 = vmatprep.subr.bf16.mxu0 0
    %266 = vmatpush1.bf16.msra.mxu0 0
    %267 = vmatprep.subr.bf16.mxu0 0
    %268 = vmatpush1.bf16.msra.mxu0 0
    %269 = vmatprep.subr.bf16.mxu0 0
    %270 = vmatpush1.bf16.msra.mxu0 0
    %271 = vmatprep.mubr.bf16.mxu0 0
    %272 = vmatmul.mubr.bf16.gmra.mrb[0].mxu0 %v192
    %v273 = vpop.f32.mrb[0].mxu0
    %v274 = vadd.f32 %v96, %v273
    %v275 = vpop.f32.mrb[0].mxu0
    %v276 = vpop.f32.mrb[0].mxu0
    %v277 = vadd.f32 %v96, %v276
    %v278 = vpop.f32.mrb[0].mxu0
    %279 = vmatprep.mubr.bf16.mxu0 0
    %280 = vmatmul.mubr.bf16.gmra.mrb[0].mxu0 %v195
    %v281 = vpop.f32.mrb[0].mxu0
    %v282 = vadd.f32 %v96, %v281
    %v283 = vpop.f32.mrb[0].mxu0
    %v284 = vpop.f32.mrb[0].mxu0
    %v285 = vadd.f32 %v96, %v284
    %v286 = vpop.f32.mrb[0].mxu0
    %287 = vmatprep.mubr.bf16.mxu0 0
    %288 = vmatmul.mubr.bf16.gmra.mrb[0].mxu0 %v198
    %v289 = vpop.f32.mrb[0].mxu0
    %v290 = vadd.f32 %v96, %v289
    %v291 = vpop.f32.mrb[0].mxu0
    %v292 = vpop.f32.mrb[0].mxu0
    %v293 = vadd.f32 %v96, %v292
    %v294 = vpop.f32.mrb[0].mxu0
    %295 = vmatprep.mubr.bf16.mxu0 0
    %296 = vmatmul.mubr.bf16.gmra.mrb[0].mxu0 %v201
    %v297 = vpop.f32.mrb[0].mxu0
    %v298 = vadd.f32 %v96, %v297
    %v299 = vpop.f32.mrb[0].mxu0
    %v300 = vpop.f32.mrb[0].mxu0
    %v301 = vadd.f32 %v96, %v300
    %v302 = vpop.f32.mrb[0].mxu0
    %303 = vmatprep.mubr.bf16.mxu0 0
    %304 = vmatmul.mubr.bf16.gmra.mrb[0].mxu0 %v204
    %v305 = vpop.f32.mrb[0].mxu0
    %v306 = vadd.f32 %v96, %v305
    %v307 = vpop.f32.mrb[0].mxu0
    %v308 = vpop.f32.mrb[0].mxu0
    %v309 = vadd.f32 %v96, %v308
    %v310 = vpop.f32.mrb[0].mxu0
    %311 = vmatprep.mubr.bf16.mxu0 0
    %312 = vmatmul.mubr.bf16.gmra.mrb[0].mxu0 %v207
    %v313 = vpop.f32.mrb[0].mxu0
    %v314 = vadd.f32 %v96, %v313
    %v315 = vpop.f32.mrb[0].mxu0
    %v316 = vpop.f32.mrb[0].mxu0
    %v317 = vadd.f32 %v96, %v316
    %v318 = vpop.f32.mrb[0].mxu0
    %319 = vmatprep.mubr.bf16.mxu0 0
    %320 = vmatmul.mubr.bf16.gmra.mrb[0].mxu0 %v210
    %v321 = vpop.f32.mrb[0].mxu0
    %v322 = vadd.f32 %v96, %v321
    %v323 = vpop.f32.mrb[0].mxu0
    %v324 = vpop.f32.mrb[0].mxu0
    %v325 = vadd.f32 %v96, %v324
    %v326 = vpop.f32.mrb[0].mxu0
    %327 = vmatprep.mubr.bf16.mxu0 0
    %328 = vmatmul.mubr.bf16.gmra.mrb[0].mxu0 %v213
    %v329 = vpop.f32.mrb[0].mxu0
    %v330 = vadd.f32 %v96, %v329
    %v331 = vpop.f32.mrb[0].mxu0
    %v332 = vpop.f32.mrb[0].mxu0
    %v333 = vadd.f32 %v96, %v332
    %v334 = vpop.f32.mrb[0].mxu0
    %335 = vmatprep.mubr.bf16.mxu0 0
    %336 = vmatmul.mubr.bf16.gmra.mrb[0].mxu0 %v216
    %v337 = vpop.f32.mrb[0].mxu0
    %v338 = vadd.f32 %v96, %v337
    %v339 = vpop.f32.mrb[0].mxu0
    %v340 = vpop.f32.mrb[0].mxu0
    %v341 = vadd.f32 %v96, %v340
    %v342 = vpop.f32.mrb[0].mxu0
    %343 = vmatprep.mubr.bf16.mxu0 0
    %344 = vmatmul.mubr.bf16.gmra.mrb[0].mxu0 %v219
    %v345 = vpop.f32.mrb[0].mxu0
    %v346 = vadd.f32 %v96, %v345
    %v347 = vpop.f32.mrb[0].mxu0
    %v348 = vpop.f32.mrb[0].mxu0
    %v349 = vadd.f32 %v96, %v348
    %v350 = vpop.f32.mrb[0].mxu0
    %351 = vmatprep.mubr.bf16.mxu0 0
    %352 = vmatmul.mubr.bf16.gmra.mrb[0].mxu0 %v222
    %v353 = vpop.f32.mrb[0].mxu0
    %v354 = vadd.f32 %v96, %v353
    %v355 = vpop.f32.mrb[0].mxu0
    %v356 = vpop.f32.mrb[0].mxu0
    %v357 = vadd.f32 %v96, %v356
    %v358 = vpop.f32.mrb[0].mxu0
    %359 = vmatprep.mubr.bf16.mxu0 0
    %360 = vmatmul.mubr.bf16.gmra.mrb[0].mxu0 %v225
    %v361 = vpop.f32.mrb[0].mxu0
    %v362 = vadd.f32 %v96, %v361
    %v363 = vpop.f32.mrb[0].mxu0
    %v364 = vpop.f32.mrb[0].mxu0
    %v365 = vadd.f32 %v96, %v364
    %v366 = vpop.f32.mrb[0].mxu0
    %367 = vmatprep.mubr.bf16.mxu0 0
    %368 = vmatmul.mubr.bf16.gmra.mrb[0].mxu0 %v228
    %v369 = vpop.f32.mrb[0].mxu0
    %v370 = vadd.f32 %v96, %v369
    %v371 = vpop.f32.mrb[0].mxu0
    %v372 = vpop.f32.mrb[0].mxu0
    %v373 = vadd.f32 %v96, %v372
    %v374 = vpop.f32.mrb[0].mxu0
    %375 = vmatprep.mubr.bf16.mxu0 0
    %376 = vmatmul.mubr.bf16.gmra.mrb[0].mxu0 %v231
    %v377 = vpop.f32.mrb[0].mxu0
    %v378 = vadd.f32 %v96, %v377
    %v379 = vpop.f32.mrb[0].mxu0
    %v380 = vpop.f32.mrb[0].mxu0
    %v381 = vadd.f32 %v96, %v380
    %v382 = vpop.f32.mrb[0].mxu0
    %383 = vmatprep.mubr.bf16.mxu0 0
    %384 = vmatmul.mubr.bf16.gmra.mrb[0].mxu0 %v234
    %v385 = vpop.f32.mrb[0].mxu0
    %v386 = vadd.f32 %v96, %v385
    %v387 = vpop.f32.mrb[0].mxu0
    %v388 = vpop.f32.mrb[0].mxu0
    %v389 = vadd.f32 %v96, %v388
    %v390 = vpop.f32.mrb[0].mxu0
    %391 = vmatprep.mubr.bf16.mxu0 0
    %392 = vmatmul.mubr.bf16.gmra.mrb[0].mxu0 %v237
    %v393 = vpop.f32.mrb[0].mxu0
    %v394 = vadd.f32 %v96, %v393
    %v395 = vpop.f32.mrb[0].mxu0
    %v396 = vpop.f32.mrb[0].mxu0
    %v397 = vadd.f32 %v96, %v396
    %v398 = vpop.f32.mrb[0].mxu0
    %399 = vdwg.mxu0
    %vm400 = vcmask 64512
    %401 = vst.msk [vmem:[#allocation8] sm:$0xff] %vm400, %v274
    %402 = vst.msk [vmem:[#allocation8 + $0x8] sm:$0xff] %vm400, %v277
    %403 = vst.msk [vmem:[#allocation8 + $0x10] sm:$0xff] %vm400, %v282
    %404 = vst.msk [vmem:[#allocation8 + $0x18] sm:$0xff] %vm400, %v285
    %405 = vst.msk [vmem:[#allocation8 + $0x20] sm:$0xff] %vm400, %v290
    %406 = vst.msk [vmem:[#allocation8 + $0x28] sm:$0xff] %vm400, %v293
    %407 = vst.msk [vmem:[#allocation8 + $0x30] sm:$0xff] %vm400, %v298
    %408 = vst.msk [vmem:[#allocation8 + $0x38] sm:$0xff] %vm400, %v301
    %409 = vst.msk [vmem:[#allocation8 + $0x40] sm:$0xff] %vm400, %v306
    %410 = vst.msk [vmem:[#allocation8 + $0x48] sm:$0xff] %vm400, %v309
    %411 = vst.msk [vmem:[#allocation8 + $0x50] sm:$0xff] %vm400, %v314
    %412 = vst.msk [vmem:[#allocation8 + $0x58] sm:$0xff] %vm400, %v317
    %413 = vst.msk [vmem:[#allocation8 + $0x60] sm:$0xff] %vm400, %v322
    %414 = vst.msk [vmem:[#allocation8 + $0x68] sm:$0xff] %vm400, %v325
    %415 = vst.msk [vmem:[#allocation8 + $0x70] sm:$0xff] %vm400, %v330
    %416 = vst.msk [vmem:[#allocation8 + $0x78] sm:$0xff] %vm400, %v333
    %417 = vst.msk [vmem:[#allocation8 + $0x80] sm:$0xff] %vm400, %v338
    %418 = vst.msk [vmem:[#allocation8 + $0x88] sm:$0xff] %vm400, %v341
    %419 = vst.msk [vmem:[#allocation8 + $0x90] sm:$0xff] %vm400, %v346
    %420 = vst.msk [vmem:[#allocation8 + $0x98] sm:$0xff] %vm400, %v349
    %421 = vst.msk [vmem:[#allocation8 + $0xa0] sm:$0xff] %vm400, %v354
    %422 = vst.msk [vmem:[#allocation8 + $0xa8] sm:$0xff] %vm400, %v357
    %423 = vst.msk [vmem:[#allocation8 + $0xb0] sm:$0xff] %vm400, %v362
    %424 = vst.msk [vmem:[#allocation8 + $0xb8] sm:$0xff] %vm400, %v365
    %425 = vst.msk [vmem:[#allocation8 + $0xc0] sm:$0xff] %vm400, %v370
    %426 = vst.msk [vmem:[#allocation8 + $0xc8] sm:$0xff] %vm400, %v373
    %427 = vst.msk [vmem:[#allocation8 + $0xd0] sm:$0xff] %vm400, %v378
    %428 = vst.msk [vmem:[#allocation8 + $0xd8] sm:$0xff] %vm400, %v381
    %429 = vst.msk [vmem:[#allocation8 + $0xe0] sm:$0xff] %vm400, %v386
    %430 = vst.msk [vmem:[#allocation8 + $0xe8] sm:$0xff] %vm400, %v389
    %431 = vst.msk [vmem:[#allocation8 + $0xf0] sm:$0xff] %vm400, %v394
    %432 = vst.msk [vmem:[#allocation8 + $0xf8] sm:$0xff] %vm400, %v397
    // Predicated region
    $region26: #{tpu_custom_call.1} parent=1 // pred_check
      _
    $region27: #{tpu_custom_call.1} parent=1 // pred_check_branch
      %434 = sbr.rel (0) target = $region29
    $region28: #{tpu_custom_call.1} parent=1 // pred_region
      %s436 = ssub.s32 4096, 4096
      %437 = vsyncadd [#allocation4], %s436
      %s438 = sshll.u32 [#allocation8], 4
      %s439 = int_to_ptr.vmem [resolvable:$true] %s438
      %444 = dma.vmem_to_hbm [thread:$0]  %s439, 4096, %s3, [#allocation4], 128, 128, 8
    $region29: #{tpu_custom_call.1} parent=1 // pred_fallthru
      _
    // Predicated region
    $region30: #{tpu_custom_call.1} parent=1 // pred_check
      _
    $region31: #{tpu_custom_call.1} parent=1 // pred_check_branch
      %446 = sbr.rel (0) target = $region33
    $region32: #{tpu_custom_call.1} parent=1 // pred_region
      %447 = dma.done [#allocation4], 4096
    $region33: #{tpu_custom_call.1} parent=1 // pred_fallthru
      _
    %448 = vsyncpa [#allocation3], 1
    %449 = vsyncpa [#allocation6], 1
    %450 = vsyncpa [#allocation4], 1

</llo_original>
